<compile_context>
chip_gen: v7x
topology: tpu7x:2x2x1
jax: 0.10.0
libtpu: 0.0.40
codegen_flags: <defaults>
</compile_context>

<pallas_src>
import functools

import jax
import jax.numpy as jnp
from jax.experimental import pallas as pl
from jax.experimental.pallas import tpu as pltpu

_EPS = 1e-6


# ---------------------------------------------------------------------------
# Kernels
# ---------------------------------------------------------------------------
def _ln_normed_f32(x, eps, approx):
    """PyTorch LayerNorm core: (x - mean) / (unbiased_std + eps); centered 2-pass."""
    d = x.shape[-1]
    denom = d - 1 if d > 1 else 1
    mean = jnp.sum(x, axis=-1, keepdims=True) * (1.0 / d)
    cen = x - mean
    var = jnp.sum(cen * cen, axis=-1, keepdims=True) * (1.0 / denom)
    inv = pl.reciprocal(jnp.sqrt(var) + eps, approx=approx)
    return cen * inv


def _resident_kernel(x_ref, w_ref, b_ref, o_ref, *, eps, approx):
    """Small/medium D: whole (folded) weight is VMEM-resident, 1-D row grid."""
    # x_ref: (TR, D)   w_ref: (D, D) bf16 (LN-affine folded)   b_ref: (1, D) f32
    x = x_ref[...].astype(jnp.float32)
    normed = _ln_normed_f32(x, eps, approx).astype(jnp.bfloat16)
    sub = jnp.dot(normed, w_ref[...], preferred_element_type=jnp.float32) + b_ref[...]
    # dropout: eval mode -> identity.
    # TODO(synk): training-mode dropout (stochastic mask via pltpu.prng_*) not implemented.
    o_ref[...] = (x + sub).astype(o_ref.dtype)


def _streamed_kernel(x_row_ref, x_col_ref, w_ref, b_ref, o_ref, normed_sc,
                     *, eps, approx):
    """Large D: 2-D grid (row tiles, weight-column tiles); LN once per row tile."""
    j = pl.program_id(1)

    @pl.when(j == 0)
    def _():
        x = x_row_ref[...].astype(jnp.float32)
        normed_sc[...] = _ln_normed_f32(x, eps, approx).astype(jnp.bfloat16)

    sub = jnp.dot(normed_sc[...], w_ref[...],
                  preferred_element_type=jnp.float32) + b_ref[...]
    o_ref[...] = (x_col_ref[...].astype(jnp.float32) + sub).astype(o_ref.dtype)


# ---------------------------------------------------------------------------
# Tiling / VMEM policy helpers
# ---------------------------------------------------------------------------
def _vmem_capacity_bytes():
    try:
        return int(pltpu.get_tpu_info().vmem_capacity_bytes)
    except Exception:
        return 64 * 1024 * 1024            # conservative floor (v7x per-TC VMEM)


def _round_down(v, m):
    return (v // m) * m


def _block_spec(shape, index_map, buffers=None):
    """BlockSpec with optional explicit buffer count (single-buffer residents)."""
    if buffers is None:
        return pl.BlockSpec(shape, index_map)
    try:
        return pl.BlockSpec(shape, index_map, pipeline_mode=pl.Buffered(buffers))
    except (TypeError, AttributeError):    # older BlockSpec without pipeline_mode
        return pl.BlockSpec(shape, index_map)


def _choose_row_tile(R, D, bytes_per_row, budget):
    """Largest MXU/(8,128)-friendly row tile whose pipelined x+out tiles fit budget."""
    tr = max(budget // max(bytes_per_row, 1), 8)
    if R >= 512:                           # keep >= 2 row steps: megacore sharding (v7x)
        tr = min(tr, (R + 1) // 2)
    tr = min(tr, R)
    if tr < R:
        if tr >= 256:
            tr = _round_down(tr, 256)      # aligned to MXU passes (256x256 v6e/v7x)
        elif tr >= 16:
            tr = _round_down(tr, 16)       # bf16 sublane packing
        else:
            tr = 8                         # (8,128) floor
        tr = min(tr, R)
    return tr


# ---------------------------------------------------------------------------
# Public wrapper
# ---------------------------------------------------------------------------
def residual_skip_connection_with_layernorm(
        x, a_2, b_2, w, w_b, *, eps=_EPS, approx_reciprocal=True,
        row_tile=None, col_tile=None):
    """out = x + dropout(Linear(LayerNorm(x))), dropout in eval mode (identity).

    x: (B, S, D).  LayerNorm matches the PyTorch module (unbiased std, eps on std).
    The LN affine (a_2, b_2) is folded offline into the sublayer weights:
        W' = a_2[:, None] * W   (bf16 on the MXU),   b' = b_2 @ W + w_b   (f32).
    Pass bf16 `x` to halve activation HBM traffic (kernel math stays f32).
    Set approx_reciprocal=False for an exact (non-EUP-approx) LN divide.
    """
    B, S, D = x.shape
    R = B * S
    x2 = x.reshape(R, D)

    # Offline LN-affine fold into the sublayer weights (exact f32 math, bf16 cast).
    w_f32 = w.astype(jnp.float32)
    w_folded = (a_2.astype(jnp.float32)[:, None] * w_f32).astype(jnp.bfloat16)
    bias = (b_2.astype(jnp.float32) @ w_f32 + w_b.astype(jnp.float32)).reshape(1, D)

    x_bytes = x2.dtype.itemsize
    o_bytes = x_bytes
    cap = _vmem_capacity_bytes()
    budget = int(cap * 0.65)               # explicit working-set budget
    vmem_ceiling = int(cap * 0.75)         # ~96 MiB on v5e/v6e, ~48 MiB on v7x

    resident_w_bytes = D * D * 2 + D * 4          # single-buffered bf16 W' + f32 bias
    per_row_bytes = 2 * D * (x_bytes + o_bytes)   # double-buffered x tile + out tile

    cost = pl.CostEstimate(
        flops=2 * R * D * D + 8 * R * D,
        transcendentals=2 * R,                    # sqrt + reciprocal per row
        bytes_accessed=2 * R * D * x_bytes + D * D * 2 + D * 4,
    )

    use_resident = (col_tile is None and
                    resident_w_bytes + per_row_bytes * min(R, 256) <= budget)

    if use_resident:
        # ---- Path A: VMEM-resident weight, 1-D row-tiled grid -----------------
        tr = row_tile if row_tile is not None else _choose_row_tile(
            R, D, per_row_bytes, budget - resident_w_bytes)
        grid = (pl.cdiv(R, tr),)
        need = per_row_bytes * tr + resident_w_bytes + (4 << 20)
        kernel = functools.partial(_resident_kernel, eps=eps, approx=approx_reciprocal)
        out = pl.pallas_call(
            kernel,
            out_shape=jax.ShapeDtypeStruct((R, D), x2.dtype),
            grid_spec=pltpu.PrefetchScalarGridSpec(
                num_scalar_prefetch=0,
                grid=grid,
                in_specs=[
                    # TODO(synk): sweep pl.Buffered(3) on this x tile for small-D
                    # mem-bound configs on v6e.
                    pl.BlockSpec((tr, D), lambda i: (i, 0)),            # x row tile
                    _block_spec((D, D), lambda i: (0, 0), buffers=1),   # W' resident
                    _block_spec((1, D), lambda i: (0, 0), buffers=1),   # bias resident
                ],
                out_specs=pl.BlockSpec((tr, D), lambda i: (i, 0)),
            ),
            compiler_params=pltpu.CompilerParams(
                dimension_semantics=("parallel",),
                vmem_limit_bytes=int(min(max(need, 16 << 20), vmem_ceiling)),
            ),
            cost_estimate=cost,
        )(x2, w_folded, bias)
    else:
        # ---- Path B: weight too large to sit resident (or forced): stream W ---
        # 2-D grid over (row tiles, weight-column tiles); LN stats computed once
        # per row tile and the bf16 normalized rows cached in VMEM scratch.
        tr = row_tile if row_tile is not None else min(R, 256)
        tn = col_tile
        if tn is None:
            fixed = 2 * tr * D * x_bytes + tr * D * 2 + (4 << 20)
            per_col = 2 * (D * 2 + tr * (x_bytes + o_bytes) + 4)
            tn = _round_down(max((budget - fixed) // max(per_col, 1), 128), 128)
            tn = max(min(tn, D), 128)
        grid = (pl.cdiv(R, tr), pl.cdiv(D, tn))
        need = (2 * tr * D * x_bytes + tr * D * 2
                + 2 * (D * tn * 2 + tr * tn * (x_bytes + o_bytes) + tn * 4)
                + (4 << 20))
        kernel = functools.partial(_streamed_kernel, eps=eps, approx=approx_reciprocal)
        out = pl.pallas_call(
            kernel,
            out_shape=jax.ShapeDtypeStruct((R, D), x2.dtype),
            grid_spec=pltpu.PrefetchScalarGridSpec(
                num_scalar_prefetch=0,
                grid=grid,
                in_specs=[
                    pl.BlockSpec((tr, D), lambda i, j: (i, 0)),    # x row tile (LN stats)
                    pl.BlockSpec((tr, tn), lambda i, j: (i, j)),   # x col tile (residual)
                    pl.BlockSpec((D, tn), lambda i, j: (0, j)),    # W' column stream
                    pl.BlockSpec((1, tn), lambda i, j: (0, j)),    # bias column
                ],
                out_specs=pl.BlockSpec((tr, tn), lambda i, j: (i, j)),
                scratch_shapes=[pltpu.VMEM((tr, D), jnp.bfloat16)],  # cached normed rows
            ),
            compiler_params=pltpu.CompilerParams(
                dimension_semantics=("parallel", "arbitrary"),
                vmem_limit_bytes=int(min(max(need, 16 << 20), vmem_ceiling)),
            ),
            cost_estimate=cost,
        )(x2, x2, w_folded, bias)

    return out.reshape(B, S, D)


# ---------------------------------------------------------------------------
# Self-test
# ---------------------------------------------------------------------------
if __name__ == "__main__":
    key = jax.random.PRNGKey(0)
    B, S, D = 2, 64, 256

    kx, kw, ka, kb = jax.random.split(key, 4)
    x = jax.random.normal(kx, (B, S, D), dtype=jnp.float32)

    # Non-trivial LayerNorm affine so the weight fold is actually exercised.
    a_2 = 1.0 + 0.1 * jax.random.normal(ka, (D,), dtype=jnp.float32)
    b_2 = 0.1 * jax.random.normal(kb, (D,), dtype=jnp.float32)

    # Deterministic sublayer (linear) params.
    w = jax.random.normal(kw, (D, D), dtype=jnp.float32) * 0.02
    w_b = 0.01 * jnp.ones((D,), dtype=jnp.float32)

    # Reference in plain f32 JAX (exact PyTorch math: unbiased std, eps on std).
    mean = jnp.mean(x, axis=-1, keepdims=True)
    cen = x - mean
    std = jnp.sqrt(jnp.sum(cen * cen, axis=-1, keepdims=True) / (D - 1))
    normed = a_2 * cen / (std + _EPS) + b_2
    ref = x + (normed @ w + w_b)

    # Path A: VMEM-resident weight (tile chooser picks the row tile).
    out_a = residual_skip_connection_with_layernorm(x, a_2, b_2, w, w_b)
    jax.block_until_ready(out_a)
    assert jnp.allclose(out_a, ref, atol=1e-2, rtol=1e-2), "resident path mismatch"

    # Path B: streamed weight-column tiles (large-D / v7x path), forced here to
    # validate the 2-D grid + LN-stats-caching logic on a small shape.
    out_b = residual_skip_connection_with_layernorm(
        x, a_2, b_2, w, w_b, row_tile=64, col_tile=128)
    jax.block_until_ready(out_b)
    assert jnp.allclose(out_b, ref, atol=1e-2, rtol=1e-2), "streamed path mismatch"

    print("KERNEL_OK")
</pallas_src>

<mosaic_0001>
module attributes {stable_mosaic.version = 11 : i64} {
  func.func @_resident_kernel(%arg0: i32, %arg1: memref<128x256xf32, #tpu.memory_space<vmem>>, %arg2: memref<256x256xbf16, #tpu.memory_space<vmem>>, %arg3: memref<1x256xf32, #tpu.memory_space<vmem>>, %arg4: memref<128x256xf32, #tpu.memory_space<vmem>>) attributes {dimension_semantics = [#tpu.dimension_semantics<parallel>], iteration_bounds = array<i64: 1>, scalar_prefetch = 0 : i64, scratch_operands = 0 : i64, tpu.core_type = #tpu.core_type<tc>, window_params = [{transform_indices = @transform_0, window_bounds = array<i64: 128, 256>}, {pipeline_mode = #tpu.pipeline_mode<synchronous>, transform_indices = @transform_1, window_bounds = array<i64: 256, 256>}, {pipeline_mode = #tpu.pipeline_mode<synchronous>, transform_indices = @transform_2, window_bounds = array<i64: 1, 256>}, {transform_indices = @transform_3, window_bounds = array<i64: 128, 256>}]} {
    %c0 = arith.constant 0 : index
    %c0_0 = arith.constant 0 : index
    %0 = vector.load %arg1[%c0, %c0_0] : memref<128x256xf32, #tpu.memory_space<vmem>>, vector<128x256xf32>
    %cst = arith.constant dense<0.000000e+00> : vector<128xf32>
    %1 = vector.multi_reduction <add>, %0, %cst [1] : vector<128x256xf32> to vector<128xf32>
    %2 = vector.shape_cast %1 : vector<128xf32> to vector<128x1xf32>
    %cst_1 = arith.constant 3.906250e-03 : f32
    %3 = vector.broadcast %cst_1 : f32 to vector<128x1xf32>
    %4 = arith.mulf %2, %3 : vector<128x1xf32>
    %5 = vector.broadcast %4 : vector<128x1xf32> to vector<128x256xf32>
    %6 = arith.subf %0, %5 : vector<128x256xf32>
    %7 = arith.mulf %6, %6 : vector<128x256xf32>
    %cst_2 = arith.constant dense<0.000000e+00> : vector<128xf32>
    %8 = vector.multi_reduction <add>, %7, %cst_2 [1] : vector<128x256xf32> to vector<128xf32>
    %9 = vector.shape_cast %8 : vector<128xf32> to vector<128x1xf32>
    %cst_3 = arith.constant 0.00392156886 : f32
    %10 = vector.broadcast %cst_3 : f32 to vector<128x1xf32>
    %11 = arith.mulf %9, %10 : vector<128x1xf32>
    %12 = math.sqrt %11 : vector<128x1xf32>
    %cst_4 = arith.constant 9.99999997E-7 : f32
    %13 = vector.broadcast %cst_4 : f32 to vector<128x1xf32>
    %14 = arith.addf %12, %13 : vector<128x1xf32>
    %15 = tpu.reciprocal %14 {approx = true} : vector<128x1xf32> -> vector<128x1xf32>
    %16 = vector.broadcast %15 : vector<128x1xf32> to vector<128x256xf32>
    %17 = arith.mulf %6, %16 : vector<128x256xf32>
    %18 = arith.truncf %17 : vector<128x256xf32> to vector<128x256xbf16>
    %c0_5 = arith.constant 0 : index
    %c0_6 = arith.constant 0 : index
    %19 = vector.load %arg2[%c0_5, %c0_6] : memref<256x256xbf16, #tpu.memory_space<vmem>>, vector<256x256xbf16>
    %cst_7 = arith.constant dense<0.000000e+00> : vector<128x256xf32>
    %20 = tpu.matmul %18, %19, %cst_7 {dimension_numbers = #tpu.dot_dimension_numbers<[1], [0], [0], [1], [0, 0, 1, 1], [], []>} : vector<128x256xbf16>, vector<256x256xbf16>, vector<128x256xf32> -> vector<128x256xf32>
    %c0_8 = arith.constant 0 : index
    %c0_9 = arith.constant 0 : index
    %21 = vector.load %arg3[%c0_8, %c0_9] : memref<1x256xf32, #tpu.memory_space<vmem>>, vector<1x256xf32>
    %22 = vector.broadcast %21 : vector<1x256xf32> to vector<128x256xf32>
    %23 = arith.addf %20, %22 : vector<128x256xf32>
    %24 = arith.addf %0, %23 : vector<128x256xf32>
    %c0_10 = arith.constant 0 : index
    %c0_11 = arith.constant 0 : index
    %25 = vector.load %arg4[%c0_10, %c0_11] : memref<128x256xf32, #tpu.memory_space<vmem>>, vector<128x256xf32>
    tpu.vector_store %arg4[%c0_10, %c0_11], %24 {strides = array<i32>} : memref<128x256xf32, #tpu.memory_space<vmem>>, vector<128x256xf32>,
    return
  }
  func.func @transform_0(%arg0: i32) -> (i32, i32) {
    %c0_i32 = arith.constant 0 : i32
    %c0_i32_0 = arith.constant 0 : i32
    return %arg0, %c0_i32 : i32, i32
  }
  func.func @transform_1(%arg0: i32) -> (i32, i32) {
    %c0_i32 = arith.constant 0 : i32
    %c0_i32_0 = arith.constant 0 : i32
    %c0_i32_1 = arith.constant 0 : i32
    return %c0_i32, %c0_i32_0 : i32, i32
  }
  func.func @transform_2(%arg0: i32) -> (i32, i32) {
    %c0_i32 = arith.constant 0 : i32
    %c0_i32_0 = arith.constant 0 : i32
    %c0_i32_1 = arith.constant 0 : i32
    return %c0_i32, %c0_i32_0 : i32, i32
  }
  func.func @transform_3(%arg0: i32) -> (i32, i32) {
    %c0_i32 = arith.constant 0 : i32
    %c0_i32_0 = arith.constant 0 : i32
    return %arg0, %c0_i32 : i32, i32
  }
}

</mosaic_0001>

<llo_original>
// kernel: tpu_custom_call.1
$region0: #{tpu_custom_call.1}
  #allocation0 [shape = 'u32[]', space=smem, size = 0x4, offset = 0x4, fixed_abs, tag = 'smem constant byte address 0x4 - core index']
  #allocation1 [shape = 'u32[144,128]{1,0:T(1,128)}', space=vmem, size = 0x12000, scoped, tag = 'internal scratch']
  %s0 = inlined_call_operand.hbm [shape: f32[128,256], index: 0, kind: input, shape index: {}]
  %s1 = inlined_call_operand.hbm [shape: bf16[256,256], index: 1, kind: input, shape index: {}]
  %s2 = inlined_call_operand.vmem [shape: f32[1,256], index: 2, kind: input, shape index: {}]
  %s3 = inlined_call_operand.hbm [shape: f32[128,256], index: 3, kind: output, shape index: {}]
  %s4 = sld [smem:[#allocation0]]
  $region30: #{tpu_custom_call.1} parent=0
    _
  %s6 = ssub.s32 1, %s4
  %s7 = scalar_select 0, %s6, %s4
  $region1: #{tpu_custom_call.1} parent=0
    #allocation2 [shape = 'u8[131072]{0}', space=vmem, size = 0x20000, scoped, tag = 'input window, operand 0, single buffered']
    #allocation3 [shape = 's32[1]{0}', space=sflag, size = 0x4, scoped, tag = 'scoped memory for tpu_custom_call.1']
    #allocation4 [shape = 's32[1]{0}', space=sflag, size = 0x4, scoped, tag = 'scoped memory for tpu_custom_call.1']
    #allocation5 [shape = 'u8[131072]{0}', space=vmem, size = 0x20000, scoped, tag = 'input window, operand 1, single buffered']
    #allocation6 [shape = 's32[1]{0}', space=sflag, size = 0x4, scoped, tag = 'scoped memory for tpu_custom_call.1']
    #allocation7 [shape = 'u8[131072]{0}', space=vmem, size = 0x20000, scoped, tag = 'output window, operand 0, single buffered']
    %8 = vsyncpa [#allocation3], 0
    %9 = vsyncpa [#allocation6], 0
    %10 = vsyncpa [#allocation4], 0
    // Predicated region
    $region2: #{tpu_custom_call.1} parent=1 // pred_check
      _
    $region3: #{tpu_custom_call.1} parent=1 // pred_check_branch
      %12 = sbr.rel (0) target = $region5
    $region4: #{tpu_custom_call.1} parent=1 // pred_region
      %s14 = ssub.s32 4096, 4096
      %15 = vsyncadd [#allocation3], %s14
      %s16 = sshll.u32 [#allocation2], 4
      %s17 = int_to_ptr.vmem [resolvable:$true] %s16
      %22 = dma.hbm_to_vmem [thread:$0]  %s0, 4096, %s17, [#allocation3], 256, 256, 16
    $region5: #{tpu_custom_call.1} parent=1 // pred_fallthru
      _
    // Predicated region
    $region6: #{tpu_custom_call.1} parent=1 // pred_check
      _
    $region7: #{tpu_custom_call.1} parent=1 // pred_check_branch
      %24 = sbr.rel (0) target = $region9
    $region8: #{tpu_custom_call.1} parent=1 // pred_region
      %s26 = ssub.s32 4096, 4096
      %27 = vsyncadd [#allocation6], %s26
      %s28 = sshll.u32 [#allocation5], 4
      %s29 = int_to_ptr.vmem [resolvable:$true] %s28
      %34 = dma.hbm_to_vmem [thread:$0]  %s1, 4096, %s29, [#allocation6], 128, 128, 8
    $region9: #{tpu_custom_call.1} parent=1 // pred_fallthru
      _
    // Predicated region
    $region10: #{tpu_custom_call.1} parent=1 // pred_check
      _
    $region11: #{tpu_custom_call.1} parent=1 // pred_check_branch
      %36 = sbr.rel (0) target = $region13
    $region12: #{tpu_custom_call.1} parent=1 // pred_region
      _
    $region13: #{tpu_custom_call.1} parent=1 // pred_fallthru
      _
    // Predicated region
    $region14: #{tpu_custom_call.1} parent=1 // pred_check
      _
    $region15: #{tpu_custom_call.1} parent=1 // pred_check_branch
      %38 = sbr.rel (0) target = $region17
    $region16: #{tpu_custom_call.1} parent=1 // pred_region
      %39 = dma.done [#allocation3], 4096
    $region17: #{tpu_custom_call.1} parent=1 // pred_fallthru
      _
    // Predicated region
    $region18: #{tpu_custom_call.1} parent=1 // pred_check
      _
    $region19: #{tpu_custom_call.1} parent=1 // pred_check_branch
      %41 = sbr.rel (0) target = $region21
    $region20: #{tpu_custom_call.1} parent=1 // pred_region
      %42 = dma.done [#allocation6], 4096
    $region21: #{tpu_custom_call.1} parent=1 // pred_fallthru
      _
    %v43 = vld [vmem:[#allocation2] sm:$0xff]
    %v44 = vld [vmem:[#allocation2 + $0x8] sm:$0xff]
    %v45 = vld [vmem:[#allocation2 + $0x10] sm:$0xff]
    %v46 = vld [vmem:[#allocation2 + $0x18] sm:$0xff]
    %v47 = vld [vmem:[#allocation2 + $0x20] sm:$0xff]
    %v48 = vld [vmem:[#allocation2 + $0x28] sm:$0xff]
    %v49 = vld [vmem:[#allocation2 + $0x30] sm:$0xff]
    %v50 = vld [vmem:[#allocation2 + $0x38] sm:$0xff]
    %v51 = vld [vmem:[#allocation2 + $0x40] sm:$0xff]
    %v52 = vld [vmem:[#allocation2 + $0x48] sm:$0xff]
    %v53 = vld [vmem:[#allocation2 + $0x50] sm:$0xff]
    %v54 = vld [vmem:[#allocation2 + $0x58] sm:$0xff]
    %v55 = vld [vmem:[#allocation2 + $0x60] sm:$0xff]
    %v56 = vld [vmem:[#allocation2 + $0x68] sm:$0xff]
    %v57 = vld [vmem:[#allocation2 + $0x70] sm:$0xff]
    %v58 = vld [vmem:[#allocation2 + $0x78] sm:$0xff]
    %v59 = vld [vmem:[#allocation2 + $0x80] sm:$0xff]
    %v60 = vld [vmem:[#allocation2 + $0x88] sm:$0xff]
    %v61 = vld [vmem:[#allocation2 + $0x90] sm:$0xff]
    %v62 = vld [vmem:[#allocation2 + $0x98] sm:$0xff]
    %v63 = vld [vmem:[#allocation2 + $0xa0] sm:$0xff]
    %v64 = vld [vmem:[#allocation2 + $0xa8] sm:$0xff]
    %v65 = vld [vmem:[#allocation2 + $0xb0] sm:$0xff]
    %v66 = vld [vmem:[#allocation2 + $0xb8] sm:$0xff]
    %v67 = vld [vmem:[#allocation2 + $0xc0] sm:$0xff]
    %v68 = vld [vmem:[#allocation2 + $0xc8] sm:$0xff]
    %v69 = vld [vmem:[#allocation2 + $0xd0] sm:$0xff]
    %v70 = vld [vmem:[#allocation2 + $0xd8] sm:$0xff]
    %v71 = vld [vmem:[#allocation2 + $0xe0] sm:$0xff]
    %v72 = vld [vmem:[#allocation2 + $0xe8] sm:$0xff]
    %v73 = vld [vmem:[#allocation2 + $0xf0] sm:$0xff]
    %v74 = vld [vmem:[#allocation2 + $0xf8] sm:$0xff]
    %v75 = vadd.f32 %v43, %v44
    %76 = vadd.xlane.f32.xlu0 %v75
    %v77 = vpop.xlane.xlu0 %76
    %v78 = vadd.f32 %v45, %v46
    %79 = vadd.xlane.f32.xlu0 %v78
    %v80 = vpop.xlane.xlu0 %79
    %v81 = vadd.f32 %v47, %v48
    %82 = vadd.xlane.f32.xlu0 %v81
    %v83 = vpop.xlane.xlu0 %82
    %v84 = vadd.f32 %v49, %v50
    %85 = vadd.xlane.f32.xlu0 %v84
    %v86 = vpop.xlane.xlu0 %85
    %v87 = vadd.f32 %v51, %v52
    %88 = vadd.xlane.f32.xlu0 %v87
    %v89 = vpop.xlane.xlu0 %88
    %v90 = vadd.f32 %v53, %v54
    %91 = vadd.xlane.f32.xlu0 %v90
    %v92 = vpop.xlane.xlu0 %91
    %v93 = vadd.f32 %v55, %v56
    %94 = vadd.xlane.f32.xlu0 %v93
    %v95 = vpop.xlane.xlu0 %94
    %v96 = vadd.f32 %v57, %v58
    %97 = vadd.xlane.f32.xlu0 %v96
    %v98 = vpop.xlane.xlu0 %97
    %v99 = vadd.f32 %v59, %v60
    %100 = vadd.xlane.f32.xlu0 %v99
    %v101 = vpop.xlane.xlu0 %100
    %v102 = vadd.f32 %v61, %v62
    %103 = vadd.xlane.f32.xlu0 %v102
    %v104 = vpop.xlane.xlu0 %103
    %v105 = vadd.f32 %v63, %v64
    %106 = vadd.xlane.f32.xlu0 %v105
    %v107 = vpop.xlane.xlu0 %106
    %v108 = vadd.f32 %v65, %v66
    %109 = vadd.xlane.f32.xlu0 %v108
    %v110 = vpop.xlane.xlu0 %109
    %v111 = vadd.f32 %v67, %v68
    %112 = vadd.xlane.f32.xlu0 %v111
    %v113 = vpop.xlane.xlu0 %112
    %v114 = vadd.f32 %v69, %v70
    %115 = vadd.xlane.f32.xlu0 %v114
    %v116 = vpop.xlane.xlu0 %115
    %v117 = vadd.f32 %v71, %v72
    %118 = vadd.xlane.f32.xlu0 %v117
    %v119 = vpop.xlane.xlu0 %118
    %v120 = vadd.f32 %v73, %v74
    %121 = vadd.xlane.f32.xlu0 %v120
    %v122 = vpop.xlane.xlu0 %121
    %v123 = vmul.f32 %v77, 0.00390625
    %v124 = vmul.f32 %v80, 0.00390625
    %v125 = vmul.f32 %v83, 0.00390625
    %v126 = vmul.f32 %v86, 0.00390625
    %v127 = vmul.f32 %v89, 0.00390625
    %v128 = vmul.f32 %v92, 0.00390625
    %v129 = vmul.f32 %v95, 0.00390625
    %v130 = vmul.f32 %v98, 0.00390625
    %v131 = vmul.f32 %v101, 0.00390625
    %v132 = vmul.f32 %v104, 0.00390625
    %v133 = vmul.f32 %v107, 0.00390625
    %v134 = vmul.f32 %v110, 0.00390625
    %v135 = vmul.f32 %v113, 0.00390625
    %v136 = vmul.f32 %v116, 0.00390625
    %v137 = vmul.f32 %v119, 0.00390625
    %v138 = vmul.f32 %v122, 0.00390625
    %v139 = vsub.f32 %v43, %v123
    %v140 = vsub.f32 %v44, %v123
    %v141 = vsub.f32 %v45, %v124
    %v142 = vsub.f32 %v46, %v124
    %v143 = vsub.f32 %v47, %v125
    %v144 = vsub.f32 %v48, %v125
    %v145 = vsub.f32 %v49, %v126
    %v146 = vsub.f32 %v50, %v126
    %v147 = vsub.f32 %v51, %v127
    %v148 = vsub.f32 %v52, %v127
    %v149 = vsub.f32 %v53, %v128
    %v150 = vsub.f32 %v54, %v128
    %v151 = vsub.f32 %v55, %v129
    %v152 = vsub.f32 %v56, %v129
    %v153 = vsub.f32 %v57, %v130
    %v154 = vsub.f32 %v58, %v130
    %v155 = vsub.f32 %v59, %v131
    %v156 = vsub.f32 %v60, %v131
    %v157 = vsub.f32 %v61, %v132
    %v158 = vsub.f32 %v62, %v132
    %v159 = vsub.f32 %v63, %v133
    %v160 = vsub.f32 %v64, %v133
    %v161 = vsub.f32 %v65, %v134
    %v162 = vsub.f32 %v66, %v134
    %v163 = vsub.f32 %v67, %v135
    %v164 = vsub.f32 %v68, %v135
    %v165 = vsub.f32 %v69, %v136
    %v166 = vsub.f32 %v70, %v136
    %v167 = vsub.f32 %v71, %v137
    %v168 = vsub.f32 %v72, %v137
    %v169 = vsub.f32 %v73, %v138
    %v170 = vsub.f32 %v74, %v138
    %v171 = vmul.f32 %v139, %v139
    %v172 = vmul.f32 %v140, %v140
    %v173 = vmul.f32 %v141, %v141
    %v174 = vmul.f32 %v142, %v142
    %v175 = vmul.f32 %v143, %v143
    %v176 = vmul.f32 %v144, %v144
    %v177 = vmul.f32 %v145, %v145
    %v178 = vmul.f32 %v146, %v146
    %v179 = vmul.f32 %v147, %v147
    %v180 = vmul.f32 %v148, %v148
    %v181 = vmul.f32 %v149, %v149
    %v182 = vmul.f32 %v150, %v150
    %v183 = vmul.f32 %v151, %v151
    %v184 = vmul.f32 %v152, %v152
    %v185 = vmul.f32 %v153, %v153
    %v186 = vmul.f32 %v154, %v154
    %v187 = vmul.f32 %v155, %v155
    %v188 = vmul.f32 %v156, %v156
    %v189 = vmul.f32 %v157, %v157
    %v190 = vmul.f32 %v158, %v158
    %v191 = vmul.f32 %v159, %v159
    %v192 = vmul.f32 %v160, %v160
    %v193 = vmul.f32 %v161, %v161
    %v194 = vmul.f32 %v162, %v162
    %v195 = vmul.f32 %v163, %v163
    %v196 = vmul.f32 %v164, %v164
    %v197 = vmul.f32 %v165, %v165
    %v198 = vmul.f32 %v166, %v166
    %v199 = vmul.f32 %v167, %v167
    %v200 = vmul.f32 %v168, %v168
    %v201 = vmul.f32 %v169, %v169
    %v202 = vmul.f32 %v170, %v170
    %v203 = vadd.f32 %v171, %v172
    %204 = vadd.xlane.f32.xlu0 %v203
    %v205 = vpop.xlane.xlu0 %204
    %v206 = vadd.f32 %v173, %v174
    %207 = vadd.xlane.f32.xlu0 %v206
    %v208 = vpop.xlane.xlu0 %207
    %v209 = vadd.f32 %v175, %v176
    %210 = vadd.xlane.f32.xlu0 %v209
    %v211 = vpop.xlane.xlu0 %210
    %v212 = vadd.f32 %v177, %v178
    %213 = vadd.xlane.f32.xlu0 %v212
    %v214 = vpop.xlane.xlu0 %213
    %v215 = vadd.f32 %v179, %v180
    %216 = vadd.xlane.f32.xlu0 %v215
    %v217 = vpop.xlane.xlu0 %216
    %v218 = vadd.f32 %v181, %v182
    %219 = vadd.xlane.f32.xlu0 %v218
    %v220 = vpop.xlane.xlu0 %219
    %v221 = vadd.f32 %v183, %v184
    %222 = vadd.xlane.f32.xlu0 %v221
    %v223 = vpop.xlane.xlu0 %222
    %v224 = vadd.f32 %v185, %v186
    %225 = vadd.xlane.f32.xlu0 %v224
    %v226 = vpop.xlane.xlu0 %225
    %v227 = vadd.f32 %v187, %v188
    %228 = vadd.xlane.f32.xlu0 %v227
    %v229 = vpop.xlane.xlu0 %228
    %v230 = vadd.f32 %v189, %v190
    %231 = vadd.xlane.f32.xlu0 %v230
    %v232 = vpop.xlane.xlu0 %231
    %v233 = vadd.f32 %v191, %v192
    %234 = vadd.xlane.f32.xlu0 %v233
    %v235 = vpop.xlane.xlu0 %234
    %v236 = vadd.f32 %v193, %v194
    %237 = vadd.xlane.f32.xlu0 %v236
    %v238 = vpop.xlane.xlu0 %237
    %v239 = vadd.f32 %v195, %v196
    %240 = vadd.xlane.f32.xlu0 %v239
    %v241 = vpop.xlane.xlu0 %240
    %v242 = vadd.f32 %v197, %v198
    %243 = vadd.xlane.f32.xlu0 %v242
    %v244 = vpop.xlane.xlu0 %243
    %v245 = vadd.f32 %v199, %v200
    %246 = vadd.xlane.f32.xlu0 %v245
    %v247 = vpop.xlane.xlu0 %246
    %v248 = vadd.f32 %v201, %v202
    %249 = vadd.xlane.f32.xlu0 %v248
    %v250 = vpop.xlane.xlu0 %249
    %v251 = vmul.f32 %v205, 0.003921569
    %v252 = vmul.f32 %v208, 0.003921569
    %v253 = vmul.f32 %v211, 0.003921569
    %v254 = vmul.f32 %v214, 0.003921569
    %v255 = vmul.f32 %v217, 0.003921569
    %v256 = vmul.f32 %v220, 0.003921569
    %v257 = vmul.f32 %v223, 0.003921569
    %v258 = vmul.f32 %v226, 0.003921569
    %v259 = vmul.f32 %v229, 0.003921569
    %v260 = vmul.f32 %v232, 0.003921569
    %v261 = vmul.f32 %v235, 0.003921569
    %v262 = vmul.f32 %v238, 0.003921569
    %v263 = vmul.f32 %v241, 0.003921569
    %v264 = vmul.f32 %v244, 0.003921569
    %v265 = vmul.f32 %v247, 0.003921569
    %v266 = vmul.f32 %v250, 0.003921569
    %v267 = vrsqrt.pop %v251
    %v268 = vmul.f32 %v251, %v267
    %vm269 = vcmp.eq.f32.partialorder %v251, inf
    %v270 = vsel %vm269, %v251, %v268
    %vm271 = vcmp.eq.f32.partialorder %v251, 0.0
    %v272 = vand.u32 %v251, 2147483648
    %v273 = vsel %vm271, %v272, %v270
    %v274 = vrsqrt.pop %v252
    %v275 = vmul.f32 %v252, %v274
    %vm276 = vcmp.eq.f32.partialorder %v252, inf
    %v277 = vsel %vm276, %v252, %v275
    %vm278 = vcmp.eq.f32.partialorder %v252, 0.0
    %v279 = vand.u32 %v252, 2147483648
    %v280 = vsel %vm278, %v279, %v277
    %v281 = vrsqrt.pop %v253
    %v282 = vmul.f32 %v253, %v281
    %vm283 = vcmp.eq.f32.partialorder %v253, inf
    %v284 = vsel %vm283, %v253, %v282
    %vm285 = vcmp.eq.f32.partialorder %v253, 0.0
    %v286 = vand.u32 %v253, 2147483648
    %v287 = vsel %vm285, %v286, %v284
    %v288 = vrsqrt.pop %v254
    %v289 = vmul.f32 %v254, %v288
    %vm290 = vcmp.eq.f32.partialorder %v254, inf
    %v291 = vsel %vm290, %v254, %v289
    %vm292 = vcmp.eq.f32.partialorder %v254, 0.0
    %v293 = vand.u32 %v254, 2147483648
    %v294 = vsel %vm292, %v293, %v291
    %v295 = vrsqrt.pop %v255
    %v296 = vmul.f32 %v255, %v295
    %vm297 = vcmp.eq.f32.partialorder %v255, inf
    %v298 = vsel %vm297, %v255, %v296
    %vm299 = vcmp.eq.f32.partialorder %v255, 0.0
    %v300 = vand.u32 %v255, 2147483648
    %v301 = vsel %vm299, %v300, %v298
    %v302 = vrsqrt.pop %v256
    %v303 = vmul.f32 %v256, %v302
    %vm304 = vcmp.eq.f32.partialorder %v256, inf
    %v305 = vsel %vm304, %v256, %v303
    %vm306 = vcmp.eq.f32.partialorder %v256, 0.0
    %v307 = vand.u32 %v256, 2147483648
    %v308 = vsel %vm306, %v307, %v305
    %v309 = vrsqrt.pop %v257
    %v310 = vmul.f32 %v257, %v309
    %vm311 = vcmp.eq.f32.partialorder %v257, inf
    %v312 = vsel %vm311, %v257, %v310
    %vm313 = vcmp.eq.f32.partialorder %v257, 0.0
    %v314 = vand.u32 %v257, 2147483648
    %v315 = vsel %vm313, %v314, %v312
    %v316 = vrsqrt.pop %v258
    %v317 = vmul.f32 %v258, %v316
    %vm318 = vcmp.eq.f32.partialorder %v258, inf
    %v319 = vsel %vm318, %v258, %v317
    %vm320 = vcmp.eq.f32.partialorder %v258, 0.0
    %v321 = vand.u32 %v258, 2147483648
    %v322 = vsel %vm320, %v321, %v319
    %v323 = vrsqrt.pop %v259
    %v324 = vmul.f32 %v259, %v323
    %vm325 = vcmp.eq.f32.partialorder %v259, inf
    %v326 = vsel %vm325, %v259, %v324
    %vm327 = vcmp.eq.f32.partialorder %v259, 0.0
    %v328 = vand.u32 %v259, 2147483648
    %v329 = vsel %vm327, %v328, %v326
    %v330 = vrsqrt.pop %v260
    %v331 = vmul.f32 %v260, %v330
    %vm332 = vcmp.eq.f32.partialorder %v260, inf
    %v333 = vsel %vm332, %v260, %v331
    %vm334 = vcmp.eq.f32.partialorder %v260, 0.0
    %v335 = vand.u32 %v260, 2147483648
    %v336 = vsel %vm334, %v335, %v333
    %v337 = vrsqrt.pop %v261
    %v338 = vmul.f32 %v261, %v337
    %vm339 = vcmp.eq.f32.partialorder %v261, inf
    %v340 = vsel %vm339, %v261, %v338
    %vm341 = vcmp.eq.f32.partialorder %v261, 0.0
    %v342 = vand.u32 %v261, 2147483648
    %v343 = vsel %vm341, %v342, %v340
    %v344 = vrsqrt.pop %v262
    %v345 = vmul.f32 %v262, %v344
    %vm346 = vcmp.eq.f32.partialorder %v262, inf
    %v347 = vsel %vm346, %v262, %v345
    %vm348 = vcmp.eq.f32.partialorder %v262, 0.0
    %v349 = vand.u32 %v262, 2147483648
    %v350 = vsel %vm348, %v349, %v347
    %v351 = vrsqrt.pop %v263
    %v352 = vmul.f32 %v263, %v351
    %vm353 = vcmp.eq.f32.partialorder %v263, inf
    %v354 = vsel %vm353, %v263, %v352
    %vm355 = vcmp.eq.f32.partialorder %v263, 0.0
    %v356 = vand.u32 %v263, 2147483648
    %v357 = vsel %vm355, %v356, %v354
    %v358 = vrsqrt.pop %v264
    %v359 = vmul.f32 %v264, %v358
    %vm360 = vcmp.eq.f32.partialorder %v264, inf
    %v361 = vsel %vm360, %v264, %v359
    %vm362 = vcmp.eq.f32.partialorder %v264, 0.0
    %v363 = vand.u32 %v264, 2147483648
    %v364 = vsel %vm362, %v363, %v361
    %v365 = vrsqrt.pop %v265
    %v366 = vmul.f32 %v265, %v365
    %vm367 = vcmp.eq.f32.partialorder %v265, inf
    %v368 = vsel %vm367, %v265, %v366
    %vm369 = vcmp.eq.f32.partialorder %v265, 0.0
    %v370 = vand.u32 %v265, 2147483648
    %v371 = vsel %vm369, %v370, %v368
    %v372 = vrsqrt.pop %v266
    %v373 = vmul.f32 %v266, %v372
    %vm374 = vcmp.eq.f32.partialorder %v266, inf
    %v375 = vsel %vm374, %v266, %v373
    %vm376 = vcmp.eq.f32.partialorder %v266, 0.0
    %v377 = vand.u32 %v266, 2147483648
    %v378 = vsel %vm376, %v377, %v375
    %v379 = vadd.f32 %v273, 1e-06
    %v380 = vadd.f32 %v280, 1e-06
    %v381 = vadd.f32 %v287, 1e-06
    %v382 = vadd.f32 %v294, 1e-06
    %v383 = vadd.f32 %v301, 1e-06
    %v384 = vadd.f32 %v308, 1e-06
    %v385 = vadd.f32 %v315, 1e-06
    %v386 = vadd.f32 %v322, 1e-06
    %v387 = vadd.f32 %v329, 1e-06
    %v388 = vadd.f32 %v336, 1e-06
    %v389 = vadd.f32 %v343, 1e-06
    %v390 = vadd.f32 %v350, 1e-06
    %v391 = vadd.f32 %v357, 1e-06
    %v392 = vadd.f32 %v364, 1e-06
    %v393 = vadd.f32 %v371, 1e-06
    %v394 = vadd.f32 %v378, 1e-06
    %v395 = vrcp.pop %v379
    %v396 = vrcp.pop %v380
    %v397 = vrcp.pop %v381
    %v398 = vrcp.pop %v382
    %v399 = vrcp.pop %v383
    %v400 = vrcp.pop %v384
    %v401 = vrcp.pop %v385
    %v402 = vrcp.pop %v386
    %v403 = vrcp.pop %v387
    %v404 = vrcp.pop %v388
    %v405 = vrcp.pop %v389
    %v406 = vrcp.pop %v390
    %v407 = vrcp.pop %v391
    %v408 = vrcp.pop %v392
    %v409 = vrcp.pop %v393
    %v410 = vrcp.pop %v394
    %v411 = vmul.f32 %v139, %v395
    %v412 = vmul.f32 %v140, %v395
    %v413 = vmul.f32 %v141, %v396
    %v414 = vmul.f32 %v142, %v396
    %v415 = vmul.f32 %v143, %v397
    %v416 = vmul.f32 %v144, %v397
    %v417 = vmul.f32 %v145, %v398
    %v418 = vmul.f32 %v146, %v398
    %v419 = vmul.f32 %v147, %v399
    %v420 = vmul.f32 %v148, %v399
    %v421 = vmul.f32 %v149, %v400
    %v422 = vmul.f32 %v150, %v400
    %v423 = vmul.f32 %v151, %v401
    %v424 = vmul.f32 %v152, %v401
    %v425 = vmul.f32 %v153, %v402
    %v426 = vmul.f32 %v154, %v402
    %v427 = vmul.f32 %v155, %v403
    %v428 = vmul.f32 %v156, %v403
    %v429 = vmul.f32 %v157, %v404
    %v430 = vmul.f32 %v158, %v404
    %v431 = vmul.f32 %v159, %v405
    %v432 = vmul.f32 %v160, %v405
    %v433 = vmul.f32 %v161, %v406
    %v434 = vmul.f32 %v162, %v406
    %v435 = vmul.f32 %v163, %v407
    %v436 = vmul.f32 %v164, %v407
    %v437 = vmul.f32 %v165, %v408
    %v438 = vmul.f32 %v166, %v408
    %v439 = vmul.f32 %v167, %v409
    %v440 = vmul.f32 %v168, %v409
    %v441 = vmul.f32 %v169, %v410
    %v442 = vmul.f32 %v170, %v410
    %v443 = vpack.c.bf16 %v413, %v411
    %v444 = vpack.c.bf16 %v414, %v412
    %v445 = vpack.c.bf16 %v417, %v415
    %v446 = vpack.c.bf16 %v418, %v416
    %v447 = vpack.c.bf16 %v421, %v419
    %v448 = vpack.c.bf16 %v422, %v420
    %v449 = vpack.c.bf16 %v425, %v423
    %v450 = vpack.c.bf16 %v426, %v424
    %v451 = vpack.c.bf16 %v429, %v427
    %v452 = vpack.c.bf16 %v430, %v428
    %v453 = vpack.c.bf16 %v433, %v431
    %v454 = vpack.c.bf16 %v434, %v432
    %v455 = vpack.c.bf16 %v437, %v435
    %v456 = vpack.c.bf16 %v438, %v436
    %v457 = vpack.c.bf16 %v441, %v439
    %v458 = vpack.c.bf16 %v442, %v440
    %v459 = vld [vmem:[#allocation5] sm:$0xff]
    %v460 = vld [vmem:[#allocation5 + $0x8] sm:$0xff]
    %v461 = vld [vmem:[#allocation5 + $0x10] sm:$0xff]
    %v462 = vld [vmem:[#allocation5 + $0x18] sm:$0xff]
    %v463 = vld [vmem:[#allocation5 + $0x20] sm:$0xff]
    %v464 = vld [vmem:[#allocation5 + $0x28] sm:$0xff]
    %v465 = vld [vmem:[#allocation5 + $0x30] sm:$0xff]
    %v466 = vld [vmem:[#allocation5 + $0x38] sm:$0xff]
    %v467 = vld [vmem:[#allocation5 + $0x40] sm:$0xff]
    %v468 = vld [vmem:[#allocation5 + $0x48] sm:$0xff]
    %v469 = vld [vmem:[#allocation5 + $0x50] sm:$0xff]
    %v470 = vld [vmem:[#allocation5 + $0x58] sm:$0xff]
    %v471 = vld [vmem:[#allocation5 + $0x60] sm:$0xff]
    %v472 = vld [vmem:[#allocation5 + $0x68] sm:$0xff]
    %v473 = vld [vmem:[#allocation5 + $0x70] sm:$0xff]
    %v474 = vld [vmem:[#allocation5 + $0x78] sm:$0xff]
    %v475 = vld [vmem:[#allocation5 + $0x80] sm:$0xff]
    %v476 = vld [vmem:[#allocation5 + $0x88] sm:$0xff]
    %v477 = vld [vmem:[#allocation5 + $0x90] sm:$0xff]
    %v478 = vld [vmem:[#allocation5 + $0x98] sm:$0xff]
    %v479 = vld [vmem:[#allocation5 + $0xa0] sm:$0xff]
    %v480 = vld [vmem:[#allocation5 + $0xa8] sm:$0xff]
    %v481 = vld [vmem:[#allocation5 + $0xb0] sm:$0xff]
    %v482 = vld [vmem:[#allocation5 + $0xb8] sm:$0xff]
    %v483 = vld [vmem:[#allocation5 + $0xc0] sm:$0xff]
    %v484 = vld [vmem:[#allocation5 + $0xc8] sm:$0xff]
    %v485 = vld [vmem:[#allocation5 + $0xd0] sm:$0xff]
    %v486 = vld [vmem:[#allocation5 + $0xd8] sm:$0xff]
    %v487 = vld [vmem:[#allocation5 + $0xe0] sm:$0xff]
    %v488 = vld [vmem:[#allocation5 + $0xe8] sm:$0xff]
    %v489 = vld [vmem:[#allocation5 + $0xf0] sm:$0xff]
    %v490 = vld [vmem:[#allocation5 + $0xf8] sm:$0xff]
    %v491 = vld [vmem:[%s2] sm:$0x3]
    %v493 = vlaneseq
    %v494 = vshrl.u32 %v493, 7
    %v495 = vsub.s32 0, %v494
    %v496 = vrot.slane %v491, %v495
    %v497 = vlaneseq
    %v498 = vshrl.u32 %v497, 7
    %v499 = vsub.s32 1, %v498
    %v500 = vrot.slane %v491, %v499
    %v535 = vunpack.c.l.b16 %v459
    %v536 = vunpack.c.h.b16 %v459
    %v537 = vunpack.c.l.b16 %v460
    %v538 = vunpack.c.h.b16 %v460
    %v539 = vunpack.c.l.b16 %v461
    %v540 = vunpack.c.h.b16 %v461
    %v541 = vunpack.c.l.b16 %v462
    %v542 = vunpack.c.h.b16 %v462
    %v543 = vunpack.c.l.b16 %v463
    %v544 = vunpack.c.h.b16 %v463
    %v545 = vunpack.c.l.b16 %v464
    %v546 = vunpack.c.h.b16 %v464
    %v547 = vunpack.c.l.b16 %v465
    %v548 = vunpack.c.h.b16 %v465
    %v549 = vunpack.c.l.b16 %v466
    %v550 = vunpack.c.h.b16 %v466
    %v551 = vunpack.c.l.b16 %v467
    %v552 = vunpack.c.h.b16 %v467
    %v553 = vunpack.c.l.b16 %v468
    %v554 = vunpack.c.h.b16 %v468
    %v555 = vunpack.c.l.b16 %v469
    %v556 = vunpack.c.h.b16 %v469
    %v557 = vunpack.c.l.b16 %v470
    %v558 = vunpack.c.h.b16 %v470
    %v559 = vunpack.c.l.b16 %v471
    %v560 = vunpack.c.h.b16 %v471
    %v561 = vunpack.c.l.b16 %v472
    %v562 = vunpack.c.h.b16 %v472
    %v563 = vunpack.c.l.b16 %v473
    %v564 = vunpack.c.h.b16 %v473
    %v565 = vunpack.c.l.b16 %v474
    %v566 = vunpack.c.h.b16 %v474
    %v567 = vunpack.c.l.b16 %v475
    %v568 = vunpack.c.h.b16 %v475
    %v569 = vunpack.c.l.b16 %v476
    %v570 = vunpack.c.h.b16 %v476
    %v571 = vunpack.c.l.b16 %v477
    %v572 = vunpack.c.h.b16 %v477
    %v573 = vunpack.c.l.b16 %v478
    %v574 = vunpack.c.h.b16 %v478
    %v575 = vunpack.c.l.b16 %v479
    %v576 = vunpack.c.h.b16 %v479
    %v577 = vunpack.c.l.b16 %v480
    %v578 = vunpack.c.h.b16 %v480
    %v579 = vunpack.c.l.b16 %v481
    %v580 = vunpack.c.h.b16 %v481
    %v581 = vunpack.c.l.b16 %v482
    %v582 = vunpack.c.h.b16 %v482
    %v583 = vunpack.c.l.b16 %v483
    %v584 = vunpack.c.h.b16 %v483
    %v585 = vunpack.c.l.b16 %v484
    %v586 = vunpack.c.h.b16 %v484
    %v587 = vunpack.c.l.b16 %v485
    %v588 = vunpack.c.h.b16 %v485
    %v589 = vunpack.c.l.b16 %v486
    %v590 = vunpack.c.h.b16 %v486
    %v591 = vunpack.c.l.b16 %v487
    %v592 = vunpack.c.h.b16 %v487
    %v593 = vunpack.c.l.b16 %v488
    %v594 = vunpack.c.h.b16 %v488
    %v595 = vunpack.c.l.b16 %v489
    %v596 = vunpack.c.h.b16 %v489
    %v597 = vunpack.c.l.b16 %v490
    %v598 = vunpack.c.h.b16 %v490
    %v599 = vpack.c.b16 %v537, %v535
    %v600 = vpack.c.b16 %v538, %v536
    %v601 = vpack.c.b16 %v541, %v539
    %v602 = vpack.c.b16 %v542, %v540
    %v603 = vpack.c.b16 %v545, %v543
    %v604 = vpack.c.b16 %v546, %v544
    %v605 = vpack.c.b16 %v549, %v547
    %v606 = vpack.c.b16 %v550, %v548
    %v607 = vpack.c.b16 %v553, %v551
    %v608 = vpack.c.b16 %v554, %v552
    %v609 = vpack.c.b16 %v557, %v555
    %v610 = vpack.c.b16 %v558, %v556
    %v611 = vpack.c.b16 %v561, %v559
    %v612 = vpack.c.b16 %v562, %v560
    %v613 = vpack.c.b16 %v565, %v563
    %v614 = vpack.c.b16 %v566, %v564
    %v615 = vpack.c.b16 %v569, %v567
    %v616 = vpack.c.b16 %v570, %v568
    %v617 = vpack.c.b16 %v573, %v571
    %v618 = vpack.c.b16 %v574, %v572
    %v619 = vpack.c.b16 %v577, %v575
    %v620 = vpack.c.b16 %v578, %v576
    %v621 = vpack.c.b16 %v581, %v579
    %v622 = vpack.c.b16 %v582, %v580
    %v623 = vpack.c.b16 %v585, %v583
    %v624 = vpack.c.b16 %v586, %v584
    %v625 = vpack.c.b16 %v589, %v587
    %v626 = vpack.c.b16 %v590, %v588
    %v627 = vpack.c.b16 %v593, %v591
    %v628 = vpack.c.b16 %v594, %v592
    %v629 = vpack.c.b16 %v597, %v595
    %v630 = vpack.c.b16 %v598, %v596
    %663 = vmatprep.subr.bf16.mxu0 %v600
    %664 = vmatpush1.bf16.msra.mxu0 %v599
    %665 = vmatprep.subr.bf16.mxu0 %v602
    %666 = vmatpush1.bf16.msra.mxu0 %v601
    %667 = vmatprep.subr.bf16.mxu0 %v604
    %668 = vmatpush1.bf16.msra.mxu0 %v603
    %669 = vmatprep.subr.bf16.mxu0 %v606
    %670 = vmatpush1.bf16.msra.mxu0 %v605
    %671 = vmatprep.subr.bf16.mxu0 %v608
    %672 = vmatpush1.bf16.msra.mxu0 %v607
    %673 = vmatprep.subr.bf16.mxu0 %v610
    %674 = vmatpush1.bf16.msra.mxu0 %v609
    %675 = vmatprep.subr.bf16.mxu0 %v612
    %676 = vmatpush1.bf16.msra.mxu0 %v611
    %677 = vmatprep.subr.bf16.mxu0 %v614
    %678 = vmatpush1.bf16.msra.mxu0 %v613
    %679 = vmatprep.subr.bf16.mxu0 %v616
    %680 = vmatpush1.bf16.msra.mxu0 %v615
    %681 = vmatprep.subr.bf16.mxu0 %v618
    %682 = vmatpush1.bf16.msra.mxu0 %v617
    %683 = vmatprep.subr.bf16.mxu0 %v620
    %684 = vmatpush1.bf16.msra.mxu0 %v619
    %685 = vmatprep.subr.bf16.mxu0 %v622
    %686 = vmatpush1.bf16.msra.mxu0 %v621
    %687 = vmatprep.subr.bf16.mxu0 %v624
    %688 = vmatpush1.bf16.msra.mxu0 %v623
    %689 = vmatprep.subr.bf16.mxu0 %v626
    %690 = vmatpush1.bf16.msra.mxu0 %v625
    %691 = vmatprep.subr.bf16.mxu0 %v628
    %692 = vmatpush1.bf16.msra.mxu0 %v627
    %693 = vmatprep.subr.bf16.mxu0 %v630
    %694 = vmatpush1.bf16.msra.mxu0 %v629
    %695 = vmatprep.mubr.bf16.mxu0 %v444
    %696 = vmatmul.mubr.bf16.gmra.mrb[0].mxu0 %v443
    %v697 = vpop.f32.mrb[0].mxu0
    %v698 = vadd.f32 %v496, %v697
    %v699 = vpop.f32.mrb[0].mxu0
    %v700 = vadd.f32 %v500, %v699
    %v701 = vpop.f32.mrb[0].mxu0
    %v702 = vadd.f32 %v496, %v701
    %v703 = vpop.f32.mrb[0].mxu0
    %v704 = vadd.f32 %v500, %v703
    %705 = vmatprep.mubr.bf16.mxu0 %v446
    %706 = vmatmul.mubr.bf16.gmra.mrb[0].mxu0 %v445
    %v707 = vpop.f32.mrb[0].mxu0
    %v708 = vadd.f32 %v496, %v707
    %v709 = vpop.f32.mrb[0].mxu0
    %v710 = vadd.f32 %v500, %v709
    %v711 = vpop.f32.mrb[0].mxu0
    %v712 = vadd.f32 %v496, %v711
    %v713 = vpop.f32.mrb[0].mxu0
    %v714 = vadd.f32 %v500, %v713
    %715 = vmatprep.mubr.bf16.mxu0 %v448
    %716 = vmatmul.mubr.bf16.gmra.mrb[0].mxu0 %v447
    %v717 = vpop.f32.mrb[0].mxu0
    %v718 = vadd.f32 %v496, %v717
    %v719 = vpop.f32.mrb[0].mxu0
    %v720 = vadd.f32 %v500, %v719
    %v721 = vpop.f32.mrb[0].mxu0
    %v722 = vadd.f32 %v496, %v721
    %v723 = vpop.f32.mrb[0].mxu0
    %v724 = vadd.f32 %v500, %v723
    %725 = vmatprep.mubr.bf16.mxu0 %v450
    %726 = vmatmul.mubr.bf16.gmra.mrb[0].mxu0 %v449
    %v727 = vpop.f32.mrb[0].mxu0
    %v728 = vadd.f32 %v496, %v727
    %v729 = vpop.f32.mrb[0].mxu0
    %v730 = vadd.f32 %v500, %v729
    %v731 = vpop.f32.mrb[0].mxu0
    %v732 = vadd.f32 %v496, %v731
    %v733 = vpop.f32.mrb[0].mxu0
    %v734 = vadd.f32 %v500, %v733
    %735 = vmatprep.mubr.bf16.mxu0 %v452
    %736 = vmatmul.mubr.bf16.gmra.mrb[0].mxu0 %v451
    %v737 = vpop.f32.mrb[0].mxu0
    %v738 = vadd.f32 %v496, %v737
    %v739 = vpop.f32.mrb[0].mxu0
    %v740 = vadd.f32 %v500, %v739
    %v741 = vpop.f32.mrb[0].mxu0
    %v742 = vadd.f32 %v496, %v741
    %v743 = vpop.f32.mrb[0].mxu0
    %v744 = vadd.f32 %v500, %v743
    %745 = vmatprep.mubr.bf16.mxu0 %v454
    %746 = vmatmul.mubr.bf16.gmra.mrb[0].mxu0 %v453
    %v747 = vpop.f32.mrb[0].mxu0
    %v748 = vadd.f32 %v496, %v747
    %v749 = vpop.f32.mrb[0].mxu0
    %v750 = vadd.f32 %v500, %v749
    %v751 = vpop.f32.mrb[0].mxu0
    %v752 = vadd.f32 %v496, %v751
    %v753 = vpop.f32.mrb[0].mxu0
    %v754 = vadd.f32 %v500, %v753
    %755 = vmatprep.mubr.bf16.mxu0 %v456
    %756 = vmatmul.mubr.bf16.gmra.mrb[0].mxu0 %v455
    %v757 = vpop.f32.mrb[0].mxu0
    %v758 = vadd.f32 %v496, %v757
    %v759 = vpop.f32.mrb[0].mxu0
    %v760 = vadd.f32 %v500, %v759
    %v761 = vpop.f32.mrb[0].mxu0
    %v762 = vadd.f32 %v496, %v761
    %v763 = vpop.f32.mrb[0].mxu0
    %v764 = vadd.f32 %v500, %v763
    %765 = vmatprep.mubr.bf16.mxu0 %v458
    %766 = vmatmul.mubr.bf16.gmra.mrb[0].mxu0 %v457
    %v767 = vpop.f32.mrb[0].mxu0
    %v768 = vadd.f32 %v496, %v767
    %v769 = vpop.f32.mrb[0].mxu0
    %v770 = vadd.f32 %v500, %v769
    %v771 = vpop.f32.mrb[0].mxu0
    %v772 = vadd.f32 %v496, %v771
    %v773 = vpop.f32.mrb[0].mxu0
    %v774 = vadd.f32 %v500, %v773
    %775 = vdwg.mxu0
    %v776 = vadd.f32 %v43, %v698
    %v777 = vadd.f32 %v44, %v700
    %v778 = vadd.f32 %v45, %v702
    %v779 = vadd.f32 %v46, %v704
    %v780 = vadd.f32 %v47, %v708
    %v781 = vadd.f32 %v48, %v710
    %v782 = vadd.f32 %v49, %v712
    %v783 = vadd.f32 %v50, %v714
    %v784 = vadd.f32 %v51, %v718
    %v785 = vadd.f32 %v52, %v720
    %v786 = vadd.f32 %v53, %v722
    %v787 = vadd.f32 %v54, %v724
    %v788 = vadd.f32 %v55, %v728
    %v789 = vadd.f32 %v56, %v730
    %v790 = vadd.f32 %v57, %v732
    %v791 = vadd.f32 %v58, %v734
    %v792 = vadd.f32 %v59, %v738
    %v793 = vadd.f32 %v60, %v740
    %v794 = vadd.f32 %v61, %v742
    %v795 = vadd.f32 %v62, %v744
    %v796 = vadd.f32 %v63, %v748
    %v797 = vadd.f32 %v64, %v750
    %v798 = vadd.f32 %v65, %v752
    %v799 = vadd.f32 %v66, %v754
    %v800 = vadd.f32 %v67, %v758
    %v801 = vadd.f32 %v68, %v760
    %v802 = vadd.f32 %v69, %v762
    %v803 = vadd.f32 %v70, %v764
    %v804 = vadd.f32 %v71, %v768
    %v805 = vadd.f32 %v72, %v770
    %v806 = vadd.f32 %v73, %v772
    %v807 = vadd.f32 %v74, %v774
    %808 = vst [vmem:[#allocation7] sm:$0xff] %v776
    %809 = vst [vmem:[#allocation7 + $0x8] sm:$0xff] %v777
    %810 = vst [vmem:[#allocation7 + $0x10] sm:$0xff] %v778
    %811 = vst [vmem:[#allocation7 + $0x18] sm:$0xff] %v779
    %812 = vst [vmem:[#allocation7 + $0x20] sm:$0xff] %v780
    %813 = vst [vmem:[#allocation7 + $0x28] sm:$0xff] %v781
    %814 = vst [vmem:[#allocation7 + $0x30] sm:$0xff] %v782
    %815 = vst [vmem:[#allocation7 + $0x38] sm:$0xff] %v783
    %816 = vst [vmem:[#allocation7 + $0x40] sm:$0xff] %v784
    %817 = vst [vmem:[#allocation7 + $0x48] sm:$0xff] %v785
    %818 = vst [vmem:[#allocation7 + $0x50] sm:$0xff] %v786
    %819 = vst [vmem:[#allocation7 + $0x58] sm:$0xff] %v787
    %820 = vst [vmem:[#allocation7 + $0x60] sm:$0xff] %v788
    %821 = vst [vmem:[#allocation7 + $0x68] sm:$0xff] %v789
    %822 = vst [vmem:[#allocation7 + $0x70] sm:$0xff] %v790
    %823 = vst [vmem:[#allocation7 + $0x78] sm:$0xff] %v791
    %824 = vst [vmem:[#allocation7 + $0x80] sm:$0xff] %v792
    %825 = vst [vmem:[#allocation7 + $0x88] sm:$0xff] %v793
    %826 = vst [vmem:[#allocation7 + $0x90] sm:$0xff] %v794
    %827 = vst [vmem:[#allocation7 + $0x98] sm:$0xff] %v795
    %828 = vst [vmem:[#allocation7 + $0xa0] sm:$0xff] %v796
    %829 = vst [vmem:[#allocation7 + $0xa8] sm:$0xff] %v797
    %830 = vst [vmem:[#allocation7 + $0xb0] sm:$0xff] %v798
    %831 = vst [vmem:[#allocation7 + $0xb8] sm:$0xff] %v799
    %832 = vst [vmem:[#allocation7 + $0xc0] sm:$0xff] %v800
    %833 = vst [vmem:[#allocation7 + $0xc8] sm:$0xff] %v801
    %834 = vst [vmem:[#allocation7 + $0xd0] sm:$0xff] %v802
    %835 = vst [vmem:[#allocation7 + $0xd8] sm:$0xff] %v803
    %836 = vst [vmem:[#allocation7 + $0xe0] sm:$0xff] %v804
    %837 = vst [vmem:[#allocation7 + $0xe8] sm:$0xff] %v805
    %838 = vst [vmem:[#allocation7 + $0xf0] sm:$0xff] %v806
    %839 = vst [vmem:[#allocation7 + $0xf8] sm:$0xff] %v807
    // Predicated region
    $region22: #{tpu_custom_call.1} parent=1 // pred_check
      _
    $region23: #{tpu_custom_call.1} parent=1 // pred_check_branch
      %841 = sbr.rel (0) target = $region25
    $region24: #{tpu_custom_call.1} parent=1 // pred_region
      %s843 = ssub.s32 4096, 4096
      %844 = vsyncadd [#allocation4], %s843
      %s845 = sshll.u32 [#allocation7], 4
      %s846 = int_to_ptr.vmem [resolvable:$true] %s845
      %851 = dma.vmem_to_hbm [thread:$0]  %s846, 4096, %s3, [#allocation4], 256, 256, 16
    $region25: #{tpu_custom_call.1} parent=1 // pred_fallthru
      _
    // Predicated region
    $region26: #{tpu_custom_call.1} parent=1 // pred_check
      _
    $region27: #{tpu_custom_call.1} parent=1 // pred_check_branch
      %853 = sbr.rel (0) target = $region29
    $region28: #{tpu_custom_call.1} parent=1 // pred_region
      %854 = dma.done [#allocation4], 4096
    $region29: #{tpu_custom_call.1} parent=1 // pred_fallthru
      _
    %855 = vsyncpa [#allocation3], 1
    %856 = vsyncpa [#allocation6], 1
    %857 = vsyncpa [#allocation4], 1

</llo_original>
